<compile_context>
chip_gen: v7x
topology: tpu7x:2x2x1
jax: 0.10.0
libtpu: 0.0.40
codegen_flags: <defaults>
</compile_context>

<pallas_src>
import functools

import jax
import jax.numpy as jnp
from jax.experimental import pallas as pl
from jax.experimental.pallas import tpu as pltpu

ALPHA = 0.25
EPS = 1e-5
LANES = 128
SUBLANES = 8


def _round_up(x, n):
    return ((x + n - 1) // n) * n


def _bce_focal_kernel(p_ref, t_ref, out_ref, *, tm, binary_targets):
    pt = p_ref[...].astype(jnp.float32)
    tg = t_ref[...].astype(jnp.float32)

    a = pt + EPS              # pt + eps
    b = (1.0 + EPS) - pt      # 1 - pt + eps (constant pre-folded)

    if binary_targets:
        # Exact for tg in {0, 1}: one log per element instead of two (EUP is
        # the binding unit for this kernel).
        is_pos = tg > 0.5
        x = jnp.where(is_pos, a, b)
        coef = jnp.where(is_pos, (1.0 - ALPHA) * (b * b), ALPHA * (a * a))
        contrib = coef * jnp.log(x)
    else:
        # General (soft-label) form, identical to the PyTorch module.
        contrib = ((1.0 - ALPHA) * (b * b) * (tg * jnp.log(a))
                   + ALPHA * (a * a) * ((1.0 - tg) * jnp.log(b)))

    # Per-tile partial sum, kept lane/sublane dense: fold rows in groups of 8
    # (vreg-aligned reshape) and add vregs on the VPU.  Negation is applied
    # once in the wrapper.
    out_ref[...] = jnp.sum(contrib.reshape(tm // SUBLANES, SUBLANES, LANES), axis=0)


def _partial_sums(p2, t2, tm, binary_targets):
    """Run the streaming kernel over a (rows, 128) slab; rows % tm == 0."""
    rows = p2.shape[0]
    num_tiles = rows // tm
    kernel = functools.partial(_bce_focal_kernel, tm=tm, binary_targets=binary_targets)
    return pl.pallas_call(
        kernel,
        out_shape=jax.ShapeDtypeStruct((num_tiles * SUBLANES, LANES), jnp.float32),
        grid_spec=pl.GridSpec(
            grid=(num_tiles,),
            in_specs=[
                pl.BlockSpec((tm, LANES), lambda i: (i, 0)),
                pl.BlockSpec((tm, LANES), lambda i: (i, 0)),
            ],
            out_specs=pl.BlockSpec((SUBLANES, LANES), lambda i: (i, 0)),
        ),
        compiler_params=pltpu.CompilerParams(
            dimension_semantics=("parallel",),
            # Raises v5e's 16 MiB scoped default so the 8192-row tiles
            # (2 inputs x 2 buffers x 4 MiB = 16 MiB) fit with headroom;
            # matches the v6e/v7x defaults.
            vmem_limit_bytes=32 * 1024 * 1024,
        ),
    )(p2, t2)


@functools.partial(
    jax.jit, static_argnames=("tile_rows", "reduction", "assume_binary_targets"))
def bce_focal_loss(predict, target, *, tile_rows=8192, reduction="mean",
                   assume_binary_targets=False):
    assert predict.shape == target.shape
    total = predict.size

    flat_p = predict.reshape(-1)
    flat_t = target.reshape(-1)

    m = pl.cdiv(total, LANES)                       # rows of 128 lanes needed
    # Tile rows: multiple of 16 (bf16-friendly tiling), capped so the grid has
    # at least 2 tiles whenever the input is big enough (v7x: 2 TensorCores).
    tm = max(SUBLANES * 2,
             min(_round_up(tile_rows, 16), _round_up(pl.cdiv(m, 2), 16)))
    block_elems = tm * LANES

    num_full_tiles = total // block_elems
    aligned = num_full_tiles * block_elems

    partial_totals = []

    if num_full_tiles > 0:
        # Aligned prefix: zero-copy reshape of the flat input, no padding.
        p2 = flat_p[:aligned].reshape(num_full_tiles * tm, LANES)
        t2 = flat_t[:aligned].reshape(num_full_tiles * tm, LANES)
        partial_totals.append(
            jnp.sum(_partial_sums(p2, t2, tm, assume_binary_targets)))

    rem = total - aligned
    if rem > 0:
        # Small remainder (< tm*128 elements): pad with predict=EPS, target=0
        # so each padded element contributes ~1e-17 loss -> no in-kernel mask.
        rows_r = _round_up(pl.cdiv(rem, LANES), 16)
        pad = rows_r * LANES - rem
        pr = jnp.pad(flat_p[aligned:], (0, pad),
                     constant_values=EPS).reshape(rows_r, LANES)
        tr = jnp.pad(flat_t[aligned:], (0, pad),
                     constant_values=0.0).reshape(rows_r, LANES)
        partial_totals.append(
            jnp.sum(_partial_sums(pr, tr, rows_r, assume_binary_targets)))

    total_sum = -sum(partial_totals)   # single negation for the whole loss

    if reduction == "mean":
        return total_sum / jnp.float32(total)
    elif reduction == "sum":
        return total_sum
    else:
        # TODO(synk): reduction='none' (full elementwise map output) not
        # implemented; the module defaults to 'mean'.
        raise NotImplementedError("reduction='none' not supported by this kernel")


def _reference(predict, target, gamma=2, alpha=ALPHA):
    pt = predict.astype(jnp.float32)
    tg = target.astype(jnp.float32)
    loss = -((1.0 - alpha) * (1.0 - pt + EPS) ** gamma * (tg * jnp.log(pt + EPS))
             + alpha * (pt + EPS) ** gamma * ((1.0 - tg) * jnp.log(1.0 - pt + EPS)))
    return jnp.mean(loss)


if __name__ == "__main__":
    key = jax.random.PRNGKey(0)
    k1, k2 = jax.random.split(key)

    # 1) NCHW-like shape (conv logits through a sigmoid -> probabilities).
    #    2048 elements = exactly one aligned (16, 128) tile: prefix path only.
    shape = (2, 4, 16, 16)
    predict = jax.random.uniform(k1, shape, dtype=jnp.float32,
                                 minval=0.01, maxval=0.99)
    target = (jax.random.uniform(k2, shape, dtype=jnp.float32) > 0.5
              ).astype(jnp.float32)
    out = jax.block_until_ready(bce_focal_loss(predict, target))
    ref = _reference(predict, target)
    assert jnp.allclose(out, ref, rtol=1e-5, atol=1e-6), (out, ref)

    # 1b) Binary-target fast path (single log per element) on the same data.
    out_b = jax.block_until_ready(
        bce_focal_loss(predict, target, assume_binary_targets=True))
    assert jnp.allclose(out_b, ref, rtol=1e-5, atol=1e-6), (out_b, ref)

    # 2) Ragged shape: exercises the small padded-remainder call (no mask).
    shape2 = (3, 5, 7, 11)
    p2 = jax.random.uniform(k1, shape2, dtype=jnp.float32,
                            minval=0.01, maxval=0.99)
    t2 = (jax.random.uniform(k2, shape2, dtype=jnp.float32) > 0.5
          ).astype(jnp.float32)
    out2 = jax.block_until_ready(bce_focal_loss(p2, t2))
    ref2 = _reference(p2, t2)
    assert jnp.allclose(out2, ref2, rtol=1e-5, atol=1e-6), (out2, ref2)

    # 3) Both paths at once: small tile forces a multi-tile aligned prefix
    #    (parallel grid) plus a remainder call.
    shape3 = (4, 3, 40, 11)   # 5280 elements
    p3 = jax.random.uniform(k1, shape3, dtype=jnp.float32,
                            minval=0.01, maxval=0.99)
    t3 = (jax.random.uniform(k2, shape3, dtype=jnp.float32) > 0.5
          ).astype(jnp.float32)
    out3 = jax.block_until_ready(bce_focal_loss(p3, t3, tile_rows=16))
    ref3 = _reference(p3, t3)
    assert jnp.allclose(out3, ref3, rtol=1e-5, atol=1e-6), (out3, ref3)

    print("KERNEL_OK")
</pallas_src>

<mosaic_0001>
module attributes {stable_mosaic.version = 11 : i64} {
  func.func @_bce_focal_kernel(%arg0: i32, %arg1: memref<16x128xf32, #tpu.memory_space<vmem>>, %arg2: memref<16x128xf32, #tpu.memory_space<vmem>>, %arg3: memref<8x128xf32, #tpu.memory_space<vmem>>) attributes {dimension_semantics = [#tpu.dimension_semantics<parallel>], iteration_bounds = array<i64: 1>, scalar_prefetch = 0 : i64, scratch_operands = 0 : i64, tpu.core_type = #tpu.core_type<tc>, window_params = [{transform_indices = @transform_0, window_bounds = array<i64: 16, 128>}, {transform_indices = @transform_1, window_bounds = array<i64: 16, 128>}, {transform_indices = @transform_2, window_bounds = array<i64: 8, 128>}]} {
    %c0 = arith.constant 0 : index
    %c0_0 = arith.constant 0 : index
    %0 = vector.load %arg1[%c0, %c0_0] : memref<16x128xf32, #tpu.memory_space<vmem>>, vector<16x128xf32>
    %c0_1 = arith.constant 0 : index
    %c0_2 = arith.constant 0 : index
    %1 = vector.load %arg2[%c0_1, %c0_2] : memref<16x128xf32, #tpu.memory_space<vmem>>, vector<16x128xf32>
    %cst = arith.constant 9.99999974E-6 : f32
    %2 = vector.broadcast %cst : f32 to vector<16x128xf32>
    %3 = arith.addf %0, %2 : vector<16x128xf32>
    %cst_3 = arith.constant 1.000010e+00 : f32
    %4 = vector.broadcast %cst_3 : f32 to vector<16x128xf32>
    %5 = arith.subf %4, %0 : vector<16x128xf32>
    %6 = arith.mulf %5, %5 : vector<16x128xf32>
    %cst_4 = arith.constant 7.500000e-01 : f32
    %7 = vector.broadcast %cst_4 : f32 to vector<16x128xf32>
    %8 = arith.mulf %7, %6 : vector<16x128xf32>
    %9 = math.log %3 : vector<16x128xf32>
    %10 = arith.mulf %1, %9 : vector<16x128xf32>
    %11 = arith.mulf %8, %10 : vector<16x128xf32>
    %12 = arith.mulf %3, %3 : vector<16x128xf32>
    %cst_5 = arith.constant 2.500000e-01 : f32
    %13 = vector.broadcast %cst_5 : f32 to vector<16x128xf32>
    %14 = arith.mulf %13, %12 : vector<16x128xf32>
    %cst_6 = arith.constant 1.000000e+00 : f32
    %15 = vector.broadcast %cst_6 : f32 to vector<16x128xf32>
    %16 = arith.subf %15, %1 : vector<16x128xf32>
    %17 = math.log %5 : vector<16x128xf32>
    %18 = arith.mulf %16, %17 : vector<16x128xf32>
    %19 = arith.mulf %14, %18 : vector<16x128xf32>
    %20 = arith.addf %11, %19 : vector<16x128xf32>
    %21 = vector.shape_cast %20 : vector<16x128xf32> to vector<2x8x128xf32>
    %cst_7 = arith.constant dense<0.000000e+00> : vector<8x128xf32>
    %22 = vector.multi_reduction <add>, %21, %cst_7 [0] : vector<2x8x128xf32> to vector<8x128xf32>
    %c0_8 = arith.constant 0 : index
    %c0_9 = arith.constant 0 : index
    %23 = vector.load %arg3[%c0_8, %c0_9] : memref<8x128xf32, #tpu.memory_space<vmem>>, vector<8x128xf32>
    tpu.vector_store %arg3[%c0_8, %c0_9], %22 {strides = array<i32>} : memref<8x128xf32, #tpu.memory_space<vmem>>, vector<8x128xf32>,
    return
  }
  func.func @transform_0(%arg0: i32) -> (i32, i32) {
    %c0_i32 = arith.constant 0 : i32
    %c0_i32_0 = arith.constant 0 : i32
    return %arg0, %c0_i32 : i32, i32
  }
  func.func @transform_1(%arg0: i32) -> (i32, i32) {
    %c0_i32 = arith.constant 0 : i32
    %c0_i32_0 = arith.constant 0 : i32
    return %arg0, %c0_i32 : i32, i32
  }
  func.func @transform_2(%arg0: i32) -> (i32, i32) {
    %c0_i32 = arith.constant 0 : i32
    %c0_i32_0 = arith.constant 0 : i32
    return %arg0, %c0_i32 : i32, i32
  }
}

</mosaic_0001>

<llo_original>
// kernel: bce_focal_loss.1
$region0: #{bce_focal_loss.1}
  #allocation0 [shape = 'u32[]', space=smem, size = 0x4, offset = 0x4, fixed_abs, tag = 'smem constant byte address 0x4 - core index']
  #allocation1 [shape = 'u32[144,128]{1,0:T(1,128)}', space=vmem, size = 0x12000, scoped, tag = 'internal scratch']
  %s0 = inlined_call_operand.vmem [shape: f32[16,128], index: 0, kind: input, shape index: {}]
  %s1 = inlined_call_operand.vmem [shape: f32[16,128], index: 1, kind: input, shape index: {}]
  %s2 = inlined_call_operand.vmem [shape: f32[8,128], index: 2, kind: output, shape index: {}]
  %s3 = sld [smem:[#allocation0]]
  $region18: #{bce_focal_loss.1} parent=0
    _
  %s5 = ssub.s32 1, %s3
  %s6 = scalar_select 0, %s5, %s3
  // Predicated region
  $region2: #{bce_focal_loss.1} parent=0 // pred_check
    _
  $region3: #{bce_focal_loss.1} parent=0 // pred_check_branch
    %8 = sbr.rel (0) target = $region5
  $region4: #{bce_focal_loss.1} parent=0 // pred_region
    _
  $region5: #{bce_focal_loss.1} parent=0 // pred_fallthru
    _
  // Predicated region
  $region6: #{bce_focal_loss.1} parent=0 // pred_check
    _
  $region7: #{bce_focal_loss.1} parent=0 // pred_check_branch
    %10 = sbr.rel (0) target = $region9
  $region8: #{bce_focal_loss.1} parent=0 // pred_region
    _
  $region9: #{bce_focal_loss.1} parent=0 // pred_fallthru
    _
  %v11 = vld [vmem:[%s0] sm:$0xff]
  %v12 = vld [vmem:[%s0 + $0x8] sm:$0xff]
  %v13 = vld [vmem:[%s1] sm:$0xff]
  %v14 = vld [vmem:[%s1 + $0x8] sm:$0xff]
  %v15 = vadd.f32 %v11, 1e-05
  %v16 = vadd.f32 %v12, 1e-05
  %v17 = vsub.f32 1.00001, %v11
  %v18 = vsub.f32 1.00001, %v12
  %v19 = vmul.f32 %v17, %v17
  %v20 = vmul.f32 %v18, %v18
  %v21 = vmul.f32 %v19, 0.75
  %v22 = vmul.f32 %v20, 0.75
  %v23 = vlog2.pop %v15
  %v24 = vmul.f32 %v23, 0.6931472
  %v25 = vlog2.pop %v16
  %v26 = vmul.f32 %v25, 0.6931472
  %v27 = vmul.f32 %v13, %v24
  %v28 = vmul.f32 %v14, %v26
  %v29 = vmul.f32 %v21, %v27
  %v30 = vmul.f32 %v22, %v28
  %v31 = vmul.f32 %v15, %v15
  %v32 = vmul.f32 %v16, %v16
  %v33 = vmul.f32 %v31, 0.25
  %v34 = vmul.f32 %v32, 0.25
  %v35 = vsub.f32 1.0, %v13
  %v36 = vsub.f32 1.0, %v14
  %v37 = vlog2.pop %v17
  %v38 = vmul.f32 %v37, 0.6931472
  %v39 = vlog2.pop %v18
  %v40 = vmul.f32 %v39, 0.6931472
  %v41 = vmul.f32 %v35, %v38
  %v42 = vmul.f32 %v36, %v40
  %v43 = vmul.f32 %v33, %v41
  %v44 = vmul.f32 %v34, %v42
  %v45 = vadd.f32 %v29, %v43
  %v46 = vadd.f32 %v30, %v44
  %v47 = vadd.f32 %v45, %v46
  %48 = vst [vmem:[%s2] sm:$0xff] %v47
  // Predicated region
  $region10: #{bce_focal_loss.1} parent=0 // pred_check
    _
  $region11: #{bce_focal_loss.1} parent=0 // pred_check_branch
    %50 = sbr.rel (0) target = $region13
  $region12: #{bce_focal_loss.1} parent=0 // pred_region
    _
  $region13: #{bce_focal_loss.1} parent=0 // pred_fallthru
    _
  // Predicated region
  $region14: #{bce_focal_loss.1} parent=0 // pred_check
    _
  $region15: #{bce_focal_loss.1} parent=0 // pred_check_branch
    %52 = sbr.rel (0) target = $region17
  $region16: #{bce_focal_loss.1} parent=0 // pred_region
    _
  $region17: #{bce_focal_loss.1} parent=0 // pred_fallthru
    _

</llo_original>
